<compile_context>
chip_gen: v7x
topology: tpu7x:2x2x1
jax: 0.10.0
libtpu: 0.0.40
codegen_flags: <defaults>
</compile_context>

<pallas_src>
import jax
import jax.numpy as jnp
import numpy as np
from jax.experimental import pallas as pl
from jax.experimental.pallas import tpu as pltpu

_LANE = 128


# --------------------------------------------------------------------------
# Pallas kernel: per-(camera, point-row-tile) reprojection
# --------------------------------------------------------------------------
def _reproject_kernel(prm_ref, x_ref, out_ref):
    # prm_ref : SMEM [C*12]          composed projection P = intr @ [R|t], row-major
    # x_ref   : VMEM [1, 3, Rt, 128] world points (x/y/z slabs) for this tile
    # out_ref : VMEM [1, 2, Rt, 128] pixel coordinates (u, v)
    c = pl.program_id(0)
    base = c * 12

    x0 = x_ref[0, 0]          # [Rt, 128]
    x1 = x_ref[0, 1]
    x2 = x_ref[0, 2]

    def p(k):
        return prm_ref[base + k]

    # single 3x4 transform (projection already composed in the wrapper)
    pix0 = p(0) * x0 + p(1) * x1 + p(2) * x2 + p(3)
    pix1 = p(4) * x0 + p(5) * x1 + p(6) * x2 + p(7)
    pix2 = p(8) * x0 + p(9) * x1 + p(10) * x2 + p(11)

    # Exact perspective divide: the kernel is memory-bound by 3-6x on v5e/v6e,
    # so the extra VALU/EUP cost over an approx reciprocal is hidden, and it
    # avoids the ~0.1-0.2 px error the approx path introduced.
    inv = 1.0 / pix2
    out_ref[0, 0] = pix0 * inv
    out_ref[0, 1] = pix1 * inv


# --------------------------------------------------------------------------
# Tiling / layout helpers
# --------------------------------------------------------------------------
def _tile_rows(n_points, n_cameras, r_tile_max):
    """Pick (r_tile, r_pad) rows of 128 lanes.  r_tile multiple of 8."""
    r = -(-n_points // _LANE)                       # rows needed
    r8 = max(8, ((r + 7) // 8) * 8)                 # sublane-aligned row count
    r_tile = min(r8, max(8, (r_tile_max // 8) * 8))
    # Keep >=2 grid steps when possible so megacore sharding has work.
    if n_cameras * (-(-r8 // r_tile)) < 2 and r8 >= 16:
        r_tile = max(8, ((r8 // 2) // 8) * 8)
    r_pad = -(-r8 // r_tile) * r_tile
    return r_tile, r_pad


def prepare_points(wpts, r_pad):
    """[C,N,3] -> lane-dense [C,3,r_pad,128] slabs (padded lanes get z=1).

    Hoist/cache this outside a training loop: wpts are constant across
    optimization iterations, so the transpose/pad HBM pass is paid once.
    """
    C, N, _ = wpts.shape
    n_pad = r_pad * _LANE
    x_t = jnp.swapaxes(wpts.astype(jnp.float32), 1, 2)   # [C,3,N]
    if n_pad > N:
        x_t = jnp.pad(x_t, ((0, 0), (0, 0), (0, n_pad - N)))
        x_t = x_t.at[:, 2, N:].set(1.0)                   # safe positive depth
    return x_t.reshape(C, 3, r_pad, _LANE)


def compose_projection(intr_adj, pose_adj):
    """P = intr @ [R|t] flattened to [C*12] for SMEM scalar prefetch."""
    C = intr_adj.shape[0]
    P = jnp.einsum('cij,cjk->cik',
                   intr_adj.astype(jnp.float32),
                   pose_adj.astype(jnp.float32))          # [C,3,4]
    return P.reshape(C * 12)


def reproject_pallas_lane_dense(x4, params_flat, r_tile):
    """x4 [C,3,R,128], params_flat [C*12] -> lane-dense [C,2,R,128]."""
    C, _, r_pad, _ = x4.shape
    grid_t = r_pad // r_tile

    grid_spec = pltpu.PrefetchScalarGridSpec(
        num_scalar_prefetch=1,
        grid=(C, grid_t),
        in_specs=[pl.BlockSpec((1, 3, r_tile, _LANE),
                               lambda c, t, prm: (c, 0, t, 0))],
        out_specs=pl.BlockSpec((1, 2, r_tile, _LANE),
                               lambda c, t, prm: (c, 0, t, 0)),
    )
    return pl.pallas_call(
        _reproject_kernel,
        out_shape=jax.ShapeDtypeStruct((C, 2, r_pad, _LANE), jnp.float32),
        grid_spec=grid_spec,
        compiler_params=pltpu.CompilerParams(
            dimension_semantics=("parallel", "parallel")),
    )(params_flat, x4)


def reproject_pallas(wpts, intr_adj, pose_adj, *, r_tile_max=2048):
    """Module-compatible convenience wrapper.

    wpts [C,N,3], intr_adj [C,3,3], pose_adj [C,3,4] -> [C,N,2] (float32).
    """
    C, N, _ = wpts.shape
    r_tile, r_pad = _tile_rows(N, C, r_tile_max)
    x4 = prepare_points(wpts, r_pad)           # cacheable across iterations
    params = compose_projection(intr_adj, pose_adj)
    out = reproject_pallas_lane_dense(x4, params, r_tile)
    pix = out.reshape(C, 2, r_pad * _LANE)[:, :, :N]      # [C,2,N]
    return jnp.swapaxes(pix, 1, 2)                        # [C,N,2]


# --------------------------------------------------------------------------
# Parameter setup (plain JAX glue, mirrors the PyTorch module)
# --------------------------------------------------------------------------
def add_weights2intr(intr_param, img_h, img_w):
    n = intr_param.shape[0]
    intr_init = jnp.array([[img_w, 0.0, img_w / 2.0],
                           [0.0, img_w, img_h / 2.0],
                           [0.0, 0.0, 1.0]], dtype=jnp.float32)
    intr_init = jnp.broadcast_to(intr_init, (n, 3, 3))
    fx = jnp.abs(intr_init[:, 0, 0] * intr_param[:, 0])
    fy = jnp.abs(intr_init[:, 1, 1] * intr_param[:, 0])
    cx = jnp.abs(intr_init[:, 0, 2] * intr_param[:, 1])
    cy = jnp.abs(intr_init[:, 1, 2] * intr_param[:, 2])
    intr_adj = intr_init
    intr_adj = intr_adj.at[:, 0, 0].set(fx)
    intr_adj = intr_adj.at[:, 1, 1].set(fy)
    intr_adj = intr_adj.at[:, 0, 2].set(cx)
    intr_adj = intr_adj.at[:, 1, 2].set(cy)
    return intr_adj


def se3_to_SE3(tv):
    n = tv.shape[0]
    lin = tv[:, :3].reshape(n, 3, 1)
    ang = tv[:, 3:].reshape(n, 3, 1)
    theta = jnp.linalg.norm(ang, axis=1)[:, None]          # [n,1,1]
    theta2 = theta ** 2
    theta3 = theta ** 3
    near_zero = theta < 0.01
    one = jnp.ones((), tv.dtype)
    theta_nz = jnp.where(near_zero, one, theta)
    theta2_nz = jnp.where(near_zero, one, theta2)
    theta3_nz = jnp.where(near_zero, one, theta3)
    sine = jnp.sin(theta)
    cosine = jnp.where(near_zero, 8.0 / (4.0 + theta2) - 1.0, jnp.cos(theta))
    sine_by_theta = jnp.where(near_zero, 0.5 * cosine + 0.5, sine / theta_nz)
    one_minus_cos_by_t2 = jnp.where(
        near_zero, 0.5 * sine_by_theta, (1.0 - cosine) / theta2_nz)

    rot = (one_minus_cos_by_t2 * ang) @ jnp.swapaxes(ang, 1, 2)     # [n,3,3]
    rot = rot + cosine.reshape(n, 1, 1) * jnp.eye(3, dtype=tv.dtype)

    temp = sine_by_theta.reshape(n, 1) * ang.reshape(n, 3)          # [n,3]
    rot = rot.at[:, 0, 1].add(-temp[:, 2])
    rot = rot.at[:, 1, 0].add(temp[:, 2])
    rot = rot.at[:, 0, 2].add(temp[:, 1])
    rot = rot.at[:, 2, 0].add(-temp[:, 1])
    rot = rot.at[:, 1, 2].add(-temp[:, 0])
    rot = rot.at[:, 2, 1].add(temp[:, 0])

    sine_by_theta = jnp.where(near_zero, 1.0 - theta2 / 6.0, sine_by_theta)
    one_minus_cos_by_t2 = jnp.where(
        near_zero, 0.5 - theta2 / 24.0, one_minus_cos_by_t2)
    theta_minus_sine_by_t3 = jnp.where(
        near_zero, 1.0 / 6.0 - theta2 / 120.0, (theta - sine) / theta3_nz)

    trans = sine_by_theta * lin
    trans = trans + one_minus_cos_by_t2 * jnp.cross(ang, lin, axis=1)
    trans = trans + theta_minus_sine_by_t3 * (
        ang @ (jnp.swapaxes(ang, 1, 2) @ lin))
    return jnp.concatenate([rot, trans], axis=-1)                   # [n,3,4]


def optimization_for_reprojection_forward(wpts, intr_param, extr_param, config):
    """JAX/Pallas equivalent of Optimization_For_Reprojection.forward."""
    intr_adj = add_weights2intr(intr_param, config['img_h'], config['img_w'])
    pose_adj = se3_to_SE3(extr_param)
    # Forward values of the two branches are identical in the original module;
    # compute the projection once and reuse (gradient wiring not modeled here).
    reproj = None
    if config['intrinsics'] or config['extrinsics']:
        reproj = reproject_pallas(wpts, intr_adj, pose_adj)
    return {'intr': reproj if config['intrinsics'] else 0.0,
            'extr': reproj if config['extrinsics'] else 0.0}


# --------------------------------------------------------------------------
# Pure-JAX reference (literal translation of the PyTorch math) for checking
# --------------------------------------------------------------------------
def _reference_reproject(wpts, intr_adj, pose_adj):
    xh = jnp.concatenate([wpts, jnp.ones_like(wpts[..., :1])], axis=-1)
    supply = jnp.broadcast_to(jnp.array([0., 0., 0., 1.], jnp.float32),
                              pose_adj.shape)[..., :1, :]
    hom_pose = jnp.concatenate([pose_adj, supply], axis=-2)          # [C,4,4]
    cam = hom_pose @ jnp.swapaxes(xh, -2, -1)                        # [C,4,N]
    hom_intr = jnp.concatenate(
        [intr_adj, jnp.zeros_like(intr_adj[..., :1])], axis=-1)      # [C,3,4]
    pix = hom_intr @ cam
    pix = pix[..., :2, :] / pix[..., 2:, :]
    return jnp.swapaxes(pix, -2, -1)                                 # [C,N,2]


if __name__ == "__main__":
    config = {'intrinsics': True, 'extrinsics': True,
              'img_h': 480, 'img_w': 640}
    key = jax.random.PRNGKey(0)

    # ---------------- small case (C=2 cameras, N=16 points) ------------------
    C, N = 2, 16
    k0, k1 = jax.random.split(key)
    wpts = jax.random.uniform(k0, (C, N, 3), dtype=jnp.float32,
                              minval=-1.0, maxval=1.0) + jnp.array(
                                  [0.0, 0.0, 4.0], jnp.float32)
    intr_param = jnp.ones((C, 3), jnp.float32)   # as in generate_params_to_learn
    extr_param = jnp.ones((C, 6), jnp.float32)

    loss_dict = optimization_for_reprojection_forward(
        wpts, intr_param, extr_param, config)
    jax.block_until_ready(loss_dict['intr'])
    jax.block_until_ready(loss_dict['extr'])

    intr_adj = add_weights2intr(intr_param, config['img_h'], config['img_w'])
    pose_adj = se3_to_SE3(extr_param)
    ref = _reference_reproject(wpts, intr_adj, pose_adj)
    np.testing.assert_allclose(np.asarray(loss_dict['intr']), np.asarray(ref),
                               rtol=2e-3, atol=5e-2)
    np.testing.assert_allclose(np.asarray(loss_dict['extr']), np.asarray(ref),
                               rtol=2e-3, atol=5e-2)

    # ------------- exercise the tiled / padded path (N not multiple of 128) --
    N2 = 2000
    wpts2 = jax.random.uniform(k1, (C, N2, 3), dtype=jnp.float32,
                               minval=-1.0, maxval=1.0) + jnp.array(
                                   [0.0, 0.0, 4.0], jnp.float32)
    out2 = reproject_pallas(wpts2, intr_adj, pose_adj, r_tile_max=8)
    jax.block_until_ready(out2)
    ref2 = _reference_reproject(wpts2, intr_adj, pose_adj)
    np.testing.assert_allclose(np.asarray(out2), np.asarray(ref2),
                               rtol=2e-3, atol=5e-2)

    print("KERNEL_OK")
</pallas_src>

<mosaic_0001>
module attributes {stable_mosaic.version = 11 : i64} {
  func.func @_reproject_kernel(%arg0: i32, %arg1: i32, %arg2: memref<24xf32, #tpu.memory_space<smem>>, %arg3: memref<1x3x8x128xf32, #tpu.memory_space<vmem>>, %arg4: memref<1x2x8x128xf32, #tpu.memory_space<vmem>>) attributes {dimension_semantics = [#tpu.dimension_semantics<parallel>, #tpu.dimension_semantics<parallel>], iteration_bounds = array<i64: 2, 1>, scalar_prefetch = 1 : i64, scratch_operands = 0 : i64, tpu.core_type = #tpu.core_type<tc>, window_params = [{transform_indices = @transform_0, window_bounds = array<i64: 1, 3, 8, 128>}, {transform_indices = @transform_1, window_bounds = array<i64: 1, 2, 8, 128>}]} {
    %c12_i32 = arith.constant 12 : i32
    %0 = arith.muli %arg0, %c12_i32 : i32
    %c0 = arith.constant 0 : index
    %c0_0 = arith.constant 0 : index
    %c0_1 = arith.constant 0 : index
    %c0_2 = arith.constant 0 : index
    %1 = vector.load %arg3[%c0, %c0_0, %c0_1, %c0_2] : memref<1x3x8x128xf32, #tpu.memory_space<vmem>>, vector<1x1x8x128xf32>
    %2 = vector.shape_cast %1 : vector<1x1x8x128xf32> to vector<8x128xf32>
    %c0_3 = arith.constant 0 : index
    %c1 = arith.constant 1 : index
    %c0_4 = arith.constant 0 : index
    %c0_5 = arith.constant 0 : index
    %3 = vector.load %arg3[%c0_3, %c1, %c0_4, %c0_5] : memref<1x3x8x128xf32, #tpu.memory_space<vmem>>, vector<1x1x8x128xf32>
    %4 = vector.shape_cast %3 : vector<1x1x8x128xf32> to vector<8x128xf32>
    %c0_6 = arith.constant 0 : index
    %c2 = arith.constant 2 : index
    %c0_7 = arith.constant 0 : index
    %c0_8 = arith.constant 0 : index
    %5 = vector.load %arg3[%c0_6, %c2, %c0_7, %c0_8] : memref<1x3x8x128xf32, #tpu.memory_space<vmem>>, vector<1x1x8x128xf32>
    %6 = vector.shape_cast %5 : vector<1x1x8x128xf32> to vector<8x128xf32>
    %c0_i32 = arith.constant 0 : i32
    %7 = arith.addi %0, %c0_i32 : i32
    %8 = arith.index_cast %7 : i32 to index
    %9 = memref.load %arg2[%8] : memref<24xf32, #tpu.memory_space<smem>>
    %10 = vector.broadcast %9 : f32 to vector<8x128xf32>
    %11 = arith.mulf %10, %2 : vector<8x128xf32>
    %c1_i32 = arith.constant 1 : i32
    %12 = arith.addi %0, %c1_i32 : i32
    %13 = arith.index_cast %12 : i32 to index
    %14 = memref.load %arg2[%13] : memref<24xf32, #tpu.memory_space<smem>>
    %15 = vector.broadcast %14 : f32 to vector<8x128xf32>
    %16 = arith.mulf %15, %4 : vector<8x128xf32>
    %17 = arith.addf %11, %16 : vector<8x128xf32>
    %c2_i32 = arith.constant 2 : i32
    %18 = arith.addi %0, %c2_i32 : i32
    %19 = arith.index_cast %18 : i32 to index
    %20 = memref.load %arg2[%19] : memref<24xf32, #tpu.memory_space<smem>>
    %21 = vector.broadcast %20 : f32 to vector<8x128xf32>
    %22 = arith.mulf %21, %6 : vector<8x128xf32>
    %23 = arith.addf %17, %22 : vector<8x128xf32>
    %c3_i32 = arith.constant 3 : i32
    %24 = arith.addi %0, %c3_i32 : i32
    %25 = arith.index_cast %24 : i32 to index
    %26 = memref.load %arg2[%25] : memref<24xf32, #tpu.memory_space<smem>>
    %27 = vector.broadcast %26 : f32 to vector<8x128xf32>
    %28 = arith.addf %23, %27 : vector<8x128xf32>
    %c4_i32 = arith.constant 4 : i32
    %29 = arith.addi %0, %c4_i32 : i32
    %30 = arith.index_cast %29 : i32 to index
    %31 = memref.load %arg2[%30] : memref<24xf32, #tpu.memory_space<smem>>
    %32 = vector.broadcast %31 : f32 to vector<8x128xf32>
    %33 = arith.mulf %32, %2 : vector<8x128xf32>
    %c5_i32 = arith.constant 5 : i32
    %34 = arith.addi %0, %c5_i32 : i32
    %35 = arith.index_cast %34 : i32 to index
    %36 = memref.load %arg2[%35] : memref<24xf32, #tpu.memory_space<smem>>
    %37 = vector.broadcast %36 : f32 to vector<8x128xf32>
    %38 = arith.mulf %37, %4 : vector<8x128xf32>
    %39 = arith.addf %33, %38 : vector<8x128xf32>
    %c6_i32 = arith.constant 6 : i32
    %40 = arith.addi %0, %c6_i32 : i32
    %41 = arith.index_cast %40 : i32 to index
    %42 = memref.load %arg2[%41] : memref<24xf32, #tpu.memory_space<smem>>
    %43 = vector.broadcast %42 : f32 to vector<8x128xf32>
    %44 = arith.mulf %43, %6 : vector<8x128xf32>
    %45 = arith.addf %39, %44 : vector<8x128xf32>
    %c7_i32 = arith.constant 7 : i32
    %46 = arith.addi %0, %c7_i32 : i32
    %47 = arith.index_cast %46 : i32 to index
    %48 = memref.load %arg2[%47] : memref<24xf32, #tpu.memory_space<smem>>
    %49 = vector.broadcast %48 : f32 to vector<8x128xf32>
    %50 = arith.addf %45, %49 : vector<8x128xf32>
    %c8_i32 = arith.constant 8 : i32
    %51 = arith.addi %0, %c8_i32 : i32
    %52 = arith.index_cast %51 : i32 to index
    %53 = memref.load %arg2[%52] : memref<24xf32, #tpu.memory_space<smem>>
    %54 = vector.broadcast %53 : f32 to vector<8x128xf32>
    %55 = arith.mulf %54, %2 : vector<8x128xf32>
    %c9_i32 = arith.constant 9 : i32
    %56 = arith.addi %0, %c9_i32 : i32
    %57 = arith.index_cast %56 : i32 to index
    %58 = memref.load %arg2[%57] : memref<24xf32, #tpu.memory_space<smem>>
    %59 = vector.broadcast %58 : f32 to vector<8x128xf32>
    %60 = arith.mulf %59, %4 : vector<8x128xf32>
    %61 = arith.addf %55, %60 : vector<8x128xf32>
    %c10_i32 = arith.constant 10 : i32
    %62 = arith.addi %0, %c10_i32 : i32
    %63 = arith.index_cast %62 : i32 to index
    %64 = memref.load %arg2[%63] : memref<24xf32, #tpu.memory_space<smem>>
    %65 = vector.broadcast %64 : f32 to vector<8x128xf32>
    %66 = arith.mulf %65, %6 : vector<8x128xf32>
    %67 = arith.addf %61, %66 : vector<8x128xf32>
    %c11_i32 = arith.constant 11 : i32
    %68 = arith.addi %0, %c11_i32 : i32
    %69 = arith.index_cast %68 : i32 to index
    %70 = memref.load %arg2[%69] : memref<24xf32, #tpu.memory_space<smem>>
    %71 = vector.broadcast %70 : f32 to vector<8x128xf32>
    %72 = arith.addf %67, %71 : vector<8x128xf32>
    %cst = arith.constant 1.000000e+00 : f32
    %73 = vector.broadcast %cst : f32 to vector<8x128xf32>
    %74 = arith.divf %73, %72 : vector<8x128xf32>
    %75 = arith.mulf %28, %74 : vector<8x128xf32>
    %c0_9 = arith.constant 0 : index
    %c0_10 = arith.constant 0 : index
    %c0_11 = arith.constant 0 : index
    %c0_12 = arith.constant 0 : index
    %76 = vector.load %arg4[%c0_9, %c0_10, %c0_11, %c0_12] : memref<1x2x8x128xf32, #tpu.memory_space<vmem>>, vector<1x1x8x128xf32>
    %77 = vector.shape_cast %76 : vector<1x1x8x128xf32> to vector<8x128xf32>
    %78 = vector.shape_cast %75 : vector<8x128xf32> to vector<1x1x8x128xf32>
    tpu.vector_store %arg4[%c0_9, %c0_10, %c0_11, %c0_12], %78 {strides = array<i32>} : memref<1x2x8x128xf32, #tpu.memory_space<vmem>>, vector<1x1x8x128xf32>,
    %79 = arith.mulf %50, %74 : vector<8x128xf32>
    %c0_13 = arith.constant 0 : index
    %c1_14 = arith.constant 1 : index
    %c0_15 = arith.constant 0 : index
    %c0_16 = arith.constant 0 : index
    %80 = vector.load %arg4[%c0_13, %c1_14, %c0_15, %c0_16] : memref<1x2x8x128xf32, #tpu.memory_space<vmem>>, vector<1x1x8x128xf32>
    %81 = vector.shape_cast %80 : vector<1x1x8x128xf32> to vector<8x128xf32>
    %82 = vector.shape_cast %79 : vector<8x128xf32> to vector<1x1x8x128xf32>
    tpu.vector_store %arg4[%c0_13, %c1_14, %c0_15, %c0_16], %82 {strides = array<i32>} : memref<1x2x8x128xf32, #tpu.memory_space<vmem>>, vector<1x1x8x128xf32>,
    return
  }
  func.func @transform_0(%arg0: i32, %arg1: i32, %arg2: memref<24xf32, #tpu.memory_space<smem>>) -> (i32, i32, i32, i32) {
    %c0_i32 = arith.constant 0 : i32
    %c0_i32_0 = arith.constant 0 : i32
    %c0_i32_1 = arith.constant 0 : i32
    return %arg0, %c0_i32, %arg1, %c0_i32_0 : i32, i32, i32, i32
  }
  func.func @transform_1(%arg0: i32, %arg1: i32, %arg2: memref<24xf32, #tpu.memory_space<smem>>) -> (i32, i32, i32, i32) {
    %c0_i32 = arith.constant 0 : i32
    %c0_i32_0 = arith.constant 0 : i32
    %c0_i32_1 = arith.constant 0 : i32
    return %arg0, %c0_i32, %arg1, %c0_i32_0 : i32, i32, i32, i32
  }
}

</mosaic_0001>

<llo_original>
// kernel: tpu_custom_call.1
$region0: #{tpu_custom_call.1}
  #allocation0 [shape = 'u32[]', space=smem, size = 0x4, offset = 0x4, fixed_abs, tag = 'smem constant byte address 0x4 - core index']
  #allocation1 [shape = 'u32[144,128]{1,0:T(1,128)}', space=vmem, size = 0x12000, scoped, tag = 'internal scratch']
  #allocation2 [shape = 's32[1]{0}', space=sflag, size = 0x4, scoped, tag = 'scoped memory for tpu_custom_call.1']
  #allocation3 [shape = 'u8[512]{0}', space=smem, size = 0x200, scoped, tag = 'prefetched SMEM operand 0']
  %s0 = inlined_call_operand.hbm [shape: f32[24], index: 0, kind: input, shape index: {}]
  %s1 = inlined_call_operand.hbm [shape: f32[2,3,8,128], index: 1, kind: input, shape index: {}]
  %s2 = inlined_call_operand.hbm [shape: f32[2,2,8,128], index: 2, kind: output, shape index: {}]
  %s3 = sld [smem:[#allocation0]]
  $region41: #{tpu_custom_call.1} parent=0
    _
  %s5 = ssub.s32 1, %s3
  %s6 = scalar_select 0, %s5, %s3
  %8 = dma.hbm_to_smem %s0, 16, [#allocation3], [#allocation2]
  %9 = dma.done [#allocation2], 16
  %10 = sfence
  $region1: #{tpu_custom_call.1} parent=0
    #allocation4 [shape = 'u8[24576]{0}', space=vmem, size = 0x6000, scoped, tag = 'input window, operand 1']
    #allocation5 [shape = 's32[2]{0}', space=sflag, size = 0x8, scoped, tag = 'scoped memory for tpu_custom_call.1']
    #allocation6 [shape = 's32[2]{0}', space=sflag, size = 0x8, scoped, tag = 'scoped memory for tpu_custom_call.1']
    #allocation7 [shape = 'u8[16384]{0}', space=vmem, size = 0x4000, scoped, tag = 'output window, operand 0']
    %11 = vsyncpa [#allocation5], 0
    %s12 = scalar_lea.sflag [#allocation5], 1
    %13 = vsyncpa %s12, 0
    %14 = vsyncpa [#allocation6], 0
    %s15 = scalar_lea.sflag [#allocation6], 1
    %16 = vsyncpa %s15, 0
    loop: start=0, step=1, limit=4
    $region2: #{tpu_custom_call.1} parent=1 // loop_pre_header
      _
    $region3: #{tpu_custom_call.1} parent=1 // loop_header
      %s18 = sphi 0, %s22
      %p19 = scmp.ge.s32.totalorder %s18, 4
      %s25 = sphi 0, %s37
      %s26 = sphi 0, %s33
      %s27 = sphi 0, %s25
      %s28 = sphi 0, %s26
      %s29 = sphi 0, %s27
      %s30 = sphi 0, %s28
      %s42 = sphi 0, %s44
      %s45 = sphi 0, %s42
      %s46 = sphi 0, %s45
      %s62 = sphi 0, %s46
      %s70 = sphi 0, %s72
      %s73 = sphi 0, %s70
      %s74 = sphi 0, %s73
      %s90 = sphi 0, %s74
    $region4: #{tpu_custom_call.1} parent=1 // loop_header_branch
      %21 = sbr.rel (%p19) target = $region8
    $region5: #{tpu_custom_call.1} parent=1 // loop_body
      %s23 = ssub.s32 %s18, 1
      %s24 = ssub.s32 %s18, 2
      %s31 = sadd.s32 1, %s26
      %p32 = scmp.ge.s32.totalorder %s31, 1
      %s33 = scalar_select %p32, 0, %s31
      %s34 = sadd.s32 1, %s25
      %s35 = scalar_select %p32, %s34, %s25
      %p36 = scmp.ge.s32.totalorder %s35, 2
      %s37 = scalar_select %p36, 0, %s35
      %s38 = ssub.s32 %s25, %s37
      %s39 = ssub.s32 %s26, %s33
      %s40 = sor.u32 %s38, %s39
      %p41 = scmp.eq.s32.totalorder %s40, 0
      %s43 = sadd.s32 %s42, 1
      %s44 = scalar_select %p41, %s42, %s43
      %p47 = pneg %p41
      %p48 = scmp.eq.s32.totalorder %s18, 1
      %p49 = por %p47, %p48
      %p50 = scmp.ne.s32.totalorder %s42, %s45
      %p51 = scmp.eq.s32.totalorder %s18, 0
      %p52 = por %p50, %p51
      %p53 = scmp.ne.s32.totalorder %s42, %s45
      %p54 = scmp.eq.s32.totalorder %s23, 1
      %p55 = por %p53, %p54
      %p56 = scmp.ne.s32.totalorder %s45, %s46
      %p57 = scmp.eq.s32.totalorder %s23, 0
      %p58 = por %p56, %p57
      %p59 = scmp.ne.s32.totalorder %s45, %s46
      %p60 = scmp.eq.s32.totalorder %s24, 1
      %p61 = por %p59, %p60
      %p63 = scmp.ne.s32.totalorder %s46, %s62
      %p64 = scmp.eq.s32.totalorder %s24, 0
      %p65 = por %p63, %p64
      %s66 = ssub.s32 %s25, %s37
      %s67 = ssub.s32 %s26, %s33
      %s68 = sor.u32 %s66, %s67
      %p69 = scmp.eq.s32.totalorder %s68, 0
      %s71 = sadd.s32 %s70, 1
      %s72 = scalar_select %p69, %s70, %s71
      %p75 = pneg %p69
      %p76 = scmp.eq.s32.totalorder %s18, 1
      %p77 = por %p75, %p76
      %p78 = scmp.ne.s32.totalorder %s70, %s73
      %p79 = scmp.eq.s32.totalorder %s18, 0
      %p80 = por %p78, %p79
      %p81 = scmp.ne.s32.totalorder %s70, %s73
      %p82 = scmp.eq.s32.totalorder %s23, 1
      %p83 = por %p81, %p82
      %p84 = scmp.ne.s32.totalorder %s73, %s74
      %p85 = scmp.eq.s32.totalorder %s23, 0
      %p86 = por %p84, %p85
      %p87 = scmp.ne.s32.totalorder %s73, %s74
      %p88 = scmp.eq.s32.totalorder %s24, 1
      %p89 = por %p87, %p88
      %p91 = scmp.ne.s32.totalorder %s74, %s90
      %p92 = scmp.eq.s32.totalorder %s24, 0
      %p93 = por %p91, %p92
      %p94 = scmp.le.s32.totalorder 1, %s18
      %p95 = scmp.lt.s32.totalorder %s18, 3
      %p96 = pnand %p94, %p95
      %p97 = pneg %p96
      // Predicated region
      $region9: #{tpu_custom_call.1} parent=5 // pred_check
        _
      $region10: #{tpu_custom_call.1} parent=5 // pred_check_branch
        %99 = sbr.rel (%p96) target = $region12
      $region11: #{tpu_custom_call.1} parent=5 // pred_region
        %s100 = ssub.s32 %s18, 1
      $region12: #{tpu_custom_call.1} parent=5 // pred_fallthru
        _
      %p101 = scmp.lt.s32.totalorder %s18, 2
      // Predicated region
      $region13: #{tpu_custom_call.1} parent=5 // pred_check
        %p102 = pneg %p101
      $region14: #{tpu_custom_call.1} parent=5 // pred_check_branch
        %104 = sbr.rel (%p102) target = $region16
      $region15: #{tpu_custom_call.1} parent=5 // pred_region
        // Predicated region
        $region17: #{tpu_custom_call.1} parent=15 // pred_check
          %p105 = pneg %p52
        $region18: #{tpu_custom_call.1} parent=15 // pred_check_branch
          %107 = sbr.rel (%p105) target = $region20
        $region19: #{tpu_custom_call.1} parent=15 // pred_region
          %s108 = sand.u32 %s42, 1
          %s109 = scalar_lea.sflag [#allocation5], %s108
          %s110 = sand.u32 %s42, 1
          %s111 = smul.addr %s110, 24
          %s112 = scalar_lea.vmem [#allocation4], %s111
          %s114 = ssub.s32 384, 384
          %115 = vsyncadd %s109, %s114
          %s116 = smul.addr %s25, 3
          %s117 = sadd.s32 %s26, %s116
          %s118 = smul.addr %s117, 128
          %s119 = scalar_lea.hbm %s1, %s118
          %s120 = sshll.u32 %s112, 4
          %s121 = int_to_ptr.vmem [resolvable:$true] %s120
          %126 = dma.hbm_to_vmem [thread:$0]  %s119, 384, %s121, %s109, 128, 128, 8
        $region20: #{tpu_custom_call.1} parent=15 // pred_fallthru
          _
      $region16: #{tpu_custom_call.1} parent=5 // pred_fallthru
        _
      %p127 = scmp.le.s32.totalorder 1, %s18
      %p128 = scmp.lt.s32.totalorder %s18, 3
      %p129 = pnand %p127, %p128
      %p130 = pneg %p129
      // Predicated region
      $region21: #{tpu_custom_call.1} parent=5 // pred_check
        _
      $region22: #{tpu_custom_call.1} parent=5 // pred_check_branch
        %132 = sbr.rel (%p129) target = $region24
      $region23: #{tpu_custom_call.1} parent=5 // pred_region
        %s133 = ssub.s32 %s18, 1
        %s134 = sand.u32 %s45, 1
        %s135 = scalar_lea.sflag [#allocation5], %s134
        %s136 = sand.u32 %s45, 1
        %s137 = smul.addr %s136, 24
        %s138 = scalar_lea.vmem [#allocation4], %s137
        // Predicated region
        $region25: #{tpu_custom_call.1} parent=23 // pred_check
          %p139 = pneg %p58
        $region26: #{tpu_custom_call.1} parent=23 // pred_check_branch
          %141 = sbr.rel (%p139) target = $region28
        $region27: #{tpu_custom_call.1} parent=23 // pred_region
          %142 = dma.done %s135, 384
        $region28: #{tpu_custom_call.1} parent=23 // pred_fallthru
          _
        %s143 = sand.u32 %s45, 1
        %s144 = scalar_lea.sflag [#allocation5], %s143
        %s145 = sand.u32 %s45, 1
        %s146 = smul.addr %s145, 24
        %s147 = scalar_lea.vmem [#allocation4], %s146
        %p148 = pneg %p58
        %p149 = pneg %p55
        %p150 = pneg %p86
        %p151 = pneg %p83
        %s152 = sand.u32 %s73, 1
        %s153 = scalar_lea.sflag [#allocation6], %s152
        %s154 = sand.u32 %s73, 1
        %s155 = smul.addr %s154, 16
        %s156 = scalar_lea.vmem [#allocation7], %s155
        %s157 = smul.u32 %s27, 12
        %v158 = vld [vmem:[%s138] sm:$0xff]
        %s159 = scalar_lea.vmem %s138, 8 [#allocation4]
        %v160 = vld [vmem:[%s159] sm:$0xff]
        %s161 = scalar_lea.vmem %s138, 16 [#allocation4]
        %v162 = vld [vmem:[%s161] sm:$0xff]
        %s163 = sld [smem:[#allocation3 + %s157]]
        %v164 = vstv %s163
        %v165 = vmul.f32 %v164, %v158
        %s166 = sadd.s32 %s157, 1
        %s167 = sld [smem:[#allocation3 + %s166]]
        %v168 = vstv %s167
        %v169 = vmul.f32 %v168, %v160
        %v170 = vadd.f32 %v165, %v169
        %s171 = sadd.s32 %s157, 2
        %s172 = sld [smem:[#allocation3 + %s171]]
        %v173 = vstv %s172
        %v174 = vmul.f32 %v173, %v162
        %v175 = vadd.f32 %v170, %v174
        %s176 = sadd.s32 %s157, 3
        %s177 = sld [smem:[#allocation3 + %s176]]
        %v178 = vstv %s177
        %v179 = vadd.f32 %v175, %v178
        %s180 = sadd.s32 %s157, 4
        %s181 = sld [smem:[#allocation3 + %s180]]
        %v182 = vstv %s181
        %v183 = vmul.f32 %v182, %v158
        %s184 = sadd.s32 %s157, 5
        %s185 = sld [smem:[#allocation3 + %s184]]
        %v186 = vstv %s185
        %v187 = vmul.f32 %v186, %v160
        %v188 = vadd.f32 %v183, %v187
        %s189 = sadd.s32 %s157, 6
        %s190 = sld [smem:[#allocation3 + %s189]]
        %v191 = vstv %s190
        %v192 = vmul.f32 %v191, %v162
        %v193 = vadd.f32 %v188, %v192
        %s194 = sadd.s32 %s157, 7
        %s195 = sld [smem:[#allocation3 + %s194]]
        %v196 = vstv %s195
        %v197 = vadd.f32 %v193, %v196
        %s198 = sadd.s32 %s157, 8
        %s199 = sld [smem:[#allocation3 + %s198]]
        %v200 = vstv %s199
        %v201 = vmul.f32 %v200, %v158
        %s202 = sadd.s32 %s157, 9
        %s203 = sld [smem:[#allocation3 + %s202]]
        %v204 = vstv %s203
        %v205 = vmul.f32 %v204, %v160
        %v206 = vadd.f32 %v201, %v205
        %s207 = sadd.s32 %s157, 10
        %s208 = sld [smem:[#allocation3 + %s207]]
        %v209 = vstv %s208
        %v210 = vmul.f32 %v209, %v162
        %v211 = vadd.f32 %v206, %v210
        %s212 = sadd.s32 %s157, 11
        %s213 = sld [smem:[#allocation3 + %s212]]
        %v214 = vstv %s213
        %v215 = vadd.f32 %v211, %v214
        %v216 = vrcp.pop %v215
        %v217 = vmul.f32 1.0, %v216
        %v218 = vmul.f32 %v179, %v217
        %219 = vst [vmem:[%s156] sm:$0xff] %v218
        %v220 = vmul.f32 %v197, %v217
        %s221 = scalar_lea.vmem %s156, 8 [#allocation7]
        %222 = vst [vmem:[%s221] sm:$0xff] %v220
        %s223 = sand.u32 %s73, 1
        %s224 = scalar_lea.sflag [#allocation6], %s223
        %s225 = sand.u32 %s73, 1
        %s226 = smul.addr %s225, 16
        %s227 = scalar_lea.vmem [#allocation7], %s226
        // Predicated region
        $region29: #{tpu_custom_call.1} parent=23 // pred_check
          %p228 = pneg %p83
        $region30: #{tpu_custom_call.1} parent=23 // pred_check_branch
          %230 = sbr.rel (%p228) target = $region32
        $region31: #{tpu_custom_call.1} parent=23 // pred_region
          %s232 = ssub.s32 256, 256
          %233 = vsyncadd %s224, %s232
          %s234 = smul.addr %s27, 2
          %s235 = sadd.s32 %s28, %s234
          %s236 = smul.addr %s235, 128
          %s237 = scalar_lea.hbm %s2, %s236
          %s238 = sshll.u32 %s227, 4
          %s239 = int_to_ptr.vmem [resolvable:$true] %s238
          %244 = dma.vmem_to_hbm [thread:$0]  %s239, 256, %s237, %s224, 128, 128, 8
        $region32: #{tpu_custom_call.1} parent=23 // pred_fallthru
          _
      $region24: #{tpu_custom_call.1} parent=5 // pred_fallthru
        _
      %p245 = scmp.le.s32.totalorder 2, %s18
      // Predicated region
      $region33: #{tpu_custom_call.1} parent=5 // pred_check
        %p246 = pneg %p245
      $region34: #{tpu_custom_call.1} parent=5 // pred_check_branch
        %248 = sbr.rel (%p246) target = $region36
      $region35: #{tpu_custom_call.1} parent=5 // pred_region
        %s249 = ssub.s32 %s18, 2
        // Predicated region
        $region37: #{tpu_custom_call.1} parent=35 // pred_check
          %p250 = pneg %p89
        $region38: #{tpu_custom_call.1} parent=35 // pred_check_branch
          %252 = sbr.rel (%p250) target = $region40
        $region39: #{tpu_custom_call.1} parent=35 // pred_region
          %s253 = sand.u32 %s74, 1
          %s254 = scalar_lea.sflag [#allocation6], %s253
          %s255 = sand.u32 %s74, 1
          %s256 = smul.addr %s255, 16
          %s257 = scalar_lea.vmem [#allocation7], %s256
          %258 = dma.done %s254, 256
        $region40: #{tpu_custom_call.1} parent=35 // pred_fallthru
          _
      $region36: #{tpu_custom_call.1} parent=5 // pred_fallthru
        _
    $region6: #{tpu_custom_call.1} parent=1 // loop_footer
      %s22 = sadd.s32 1, %s18
    $region7: #{tpu_custom_call.1} parent=1 // loop_footer_branch
      %17 = sbr.rel target = $region3
    $region8: #{tpu_custom_call.1} parent=1 // loop_exit
      _
    %259 = vsyncpa [#allocation5], 1
    %s260 = scalar_lea.sflag [#allocation5], 1
    %261 = vsyncpa %s260, 1
    %262 = vsyncpa [#allocation6], 1
    %s263 = scalar_lea.sflag [#allocation6], 1
    %264 = vsyncpa %s263, 1

</llo_original>
